<compile_context>
chip_gen: v7x
topology: tpu7x:2x2x1
jax: 0.10.0
libtpu: 0.0.40
codegen_flags: <defaults>
</compile_context>

<pallas_src>
import jax
import jax.numpy as jnp
from jax.experimental import pallas as pl
from jax.experimental.pallas import tpu as pltpu

# ----------------------------- hyper-parameters ------------------------------
SQUEEZE = True
N_FLOWS = 2
CH_IN   = 4                      # NCHW input channels (before squeeze)
CH_C    = 8                      # conditioning channels (at squeezed resolution)
N_CHUNK = 2                      # coupling splits channels into halves
HIDDEN  = 32                     # subnet hidden width
CLAMP   = 2.0                    # clamp_activation='tanh': s = clamp * tanh(raw)
SPLIT   = True

C       = CH_IN * 4 if SQUEEZE else CH_IN   # channels seen by the flows
C_HALF  = C // N_CHUNK

TRANSFER_DTYPE = jnp.bfloat16    # activation HBM<->VMEM transfer dtype
MAX_TILE_LANES = 8192            # HW-tile target (lanes).  Live f32 state is a
                                 # few hundred B/lane, so 8K lanes fits the
                                 # default scoped VMEM on v5e (16 MiB) and
                                 # v6e/v7x (32 MiB) with 2x I/O buffering.
                                 # Sweep upward per generation if desired.


def _pick_tile(hw, target=MAX_TILE_LANES):
    """Largest HW tile <= target that divides hw (prefer multiples of 128)."""
    if hw <= target:
        return hw
    t = (target // 128) * 128
    while t >= 128:
        if hw % t == 0:
            return t
        t -= 128
    return hw  # fallback: single tile


# --------------------------------- kernel ------------------------------------
def block_kernel(x_ref, c_ref, wf_ref, w1b_ref, b1_ref, w2_ref, b2_ref,
                 out_ref, ld_ref):
    """One (batch, HW-tile) grid cell.  Channels on sublanes, pixels on lanes.

    x_ref   : (1, C, T)          bf16 squeezed activations
    c_ref   : (1, CH_C, T)       bf16 conditioning
    wf_ref  : (F, C+HIDDEN, C)   f32 fused [inv-1x1-conv W ; w1a @ W[:C/2, :]]
    w1b_ref : (F, HIDDEN, CH_C)  f32 subnet layer-1 (conditioning part)
    b1_ref  : (F, HIDDEN, 1)
    w2_ref  : (F, C, HIDDEN)     f32 subnet layer-2 (-> [s_raw, t])
    b2_ref  : (F, C, 1)
    out_ref : (1, C, T)          f32 transformed activations
    ld_ref  : (1, 1, T)          f32 per-pixel coupling log-det (channel-summed)
    """
    x  = x_ref[0].astype(jnp.float32)          # (C, T)
    cb = c_ref[0].astype(jnp.float32)          # (CH_C, T)
    ld = jnp.zeros((1, x.shape[1]), jnp.float32)

    for f in range(N_FLOWS):                   # static unroll over flows
        # Single MXU push: rows [:C] = conv output y = W @ x,
        # rows [C:] = subnet layer-1 x-path (pre-fused through W in the wrapper),
        # so the conv -> layer-1 serial dependency disappears.
        yh = jnp.dot(wf_ref[f], x, preferred_element_type=jnp.float32)  # (C+H, T)
        h = jnp.maximum(
            yh[C:, :]
            + jnp.dot(w1b_ref[f], cb, preferred_element_type=jnp.float32)
            + b1_ref[f],
            0.0)                                                        # (HID, T)
        st = jnp.dot(w2_ref[f], h, preferred_element_type=jnp.float32) \
            + b2_ref[f]                                                 # (C, T)
        s = CLAMP * jnp.tanh(st[:C_HALF, :])       # clamped log-scale (EUP)
        t = st[C_HALF:, :]
        y2 = yh[C_HALF:C, :] * jnp.exp(s) + t
        ld = ld + jnp.sum(s, axis=0, keepdims=True)
        # sublane-aligned "concat" (C_HALF = 8 = one f32 sublane tile)
        x = jnp.concatenate([yh[:C_HALF, :], y2], axis=0)               # (C, T)

    out_ref[0] = x.astype(out_ref.dtype)       # lane-dense store
    ld_ref[0]  = ld


# -------------------------------- wrapper -------------------------------------
def block_forward(x_nchw, c_nchw, params):
    B, ch_in, H, W = x_nchw.shape

    # squeeze (space-to-depth), exactly as the PyTorch view/permute/view.
    # TODO(synk): the squeeze permute stays in XLA; expressing it via BlockSpec
    # index_map would need strided sub-lane gathers it cannot express.
    if SQUEEZE:
        x = x_nchw.reshape(B, ch_in, H // 2, 2, W // 2, 2)
        x = x.transpose(0, 1, 3, 5, 2, 4)
        x = x.reshape(B, ch_in * 4, H // 2, W // 2)
    else:
        x = x_nchw
    _, _, Hs, Ws = x.shape
    HW = Hs * Ws
    T = _pick_tile(HW)
    n_tiles = HW // T

    # Natural (B, C, HW) layout: reshape is free, no wrapper transposes.
    x_in = x.reshape(B, C, HW).astype(TRANSFER_DTYPE)
    c_in = c_nchw.reshape(B, CH_C, HW).astype(TRANSFER_DTYPE)

    # Weight repack (tiny, f32, done once):
    #   wf = [W ; w1a @ W[:C/2, :]]  fuses the conv and layer-1 x-path.
    w   = params["w"].astype(jnp.float32)                         # (F, C, C)
    w1t = params["w1"].astype(jnp.float32).transpose(0, 2, 1)     # (F, HID, C/2+CH_C)
    w1a, w1b = w1t[:, :, :C_HALF], w1t[:, :, C_HALF:]
    w1x = jnp.einsum("fhk,fkc->fhc", w1a, w[:, :C_HALF, :])       # (F, HID, C)
    wf  = jnp.concatenate([w, w1x], axis=1)                       # (F, C+HID, C)
    b1  = params["b1"].astype(jnp.float32).transpose(0, 2, 1)     # (F, HID, 1)
    w2  = params["w2"].astype(jnp.float32).transpose(0, 2, 1)     # (F, C, HID)
    b2  = params["b2"].astype(jnp.float32).transpose(0, 2, 1)     # (F, C, 1)

    flops = 2 * N_FLOWS * B * HW * ((C + HIDDEN) * C + HIDDEN * CH_C + C * HIDDEN)
    transcendentals = 2 * N_FLOWS * B * HW * C_HALF      # tanh + exp per half-chan
    bytes_accessed = (x_in.nbytes + c_in.nbytes
                      + 4 * (C + 1) * B * HW
                      + 4 * (wf.size + w1b.size + b1.size + w2.size + b2.size))

    def const_spec(shape):
        # weights: constant block index -> fetched once, VMEM-resident.
        return pl.BlockSpec(shape, lambda b, t: (0,) * len(shape))

    out, ld = pl.pallas_call(
        block_kernel,
        out_shape=(jax.ShapeDtypeStruct((B, C, HW), jnp.float32),
                   jax.ShapeDtypeStruct((B, 1, HW), jnp.float32)),
        grid=(B, n_tiles),
        in_specs=[
            pl.BlockSpec((1, C, T),    lambda b, t: (b, 0, t)),
            pl.BlockSpec((1, CH_C, T), lambda b, t: (b, 0, t)),
            const_spec((N_FLOWS, C + HIDDEN, C)),
            const_spec((N_FLOWS, HIDDEN, CH_C)),
            const_spec((N_FLOWS, HIDDEN, 1)),
            const_spec((N_FLOWS, C, HIDDEN)),
            const_spec((N_FLOWS, C, 1)),
        ],
        out_specs=(pl.BlockSpec((1, C, T), lambda b, t: (b, 0, t)),
                   pl.BlockSpec((1, 1, T), lambda b, t: (b, 0, t))),
        compiler_params=pltpu.CompilerParams(
            dimension_semantics=("parallel", "parallel")),
        cost_estimate=pl.CostEstimate(flops=flops,
                                      transcendentals=transcendentals,
                                      bytes_accessed=bytes_accessed),
    )(x_in, c_in, wf, w1b, b1, w2, b2)

    # coupling log-det: per-pixel channel sums -> per-sample (tiny XLA reduce)
    log_det = ld.reshape(B, HW).sum(axis=1)
    # constant invertible-1x1-conv log-det (data-independent)
    slog = jnp.float32(0.0)
    for f in range(N_FLOWS):
        slog = slog + jnp.linalg.slogdet(params["w"][f].astype(jnp.float32))[1]
    log_det = log_det + HW * slog

    # (B, C, HW) -> NCHW (free reshape), then channel split (output.chunk(2, 1))
    y = out.reshape(B, C, Hs, Ws)
    if SPLIT:
        output, split = jnp.split(y, 2, axis=1)
    else:
        output, split = y, None
    return output, log_det, split


# --------------------------- pure-JAX reference --------------------------------
def block_forward_ref(x_nchw, c_nchw, params):
    B, ch_in, H, W = x_nchw.shape
    if SQUEEZE:
        x = x_nchw.reshape(B, ch_in, H // 2, 2, W // 2, 2)
        x = x.transpose(0, 1, 3, 5, 2, 4)
        x = x.reshape(B, ch_in * 4, H // 2, W // 2)
    else:
        x = x_nchw
    _, _, Hs, Ws = x.shape
    HW = Hs * Ws
    xl = x.transpose(0, 2, 3, 1).reshape(B, HW, C).astype(jnp.float32)
    cl = c_nchw.transpose(0, 2, 3, 1).reshape(B, HW, CH_C).astype(jnp.float32)

    ld = jnp.zeros((B,), jnp.float32)
    for f in range(N_FLOWS):
        xl = jnp.einsum("bnc,dc->bnd", xl, params["w"][f])
        ld = ld + HW * jnp.linalg.slogdet(params["w"][f])[1]
        x1, x2 = xl[..., :C_HALF], xl[..., C_HALF:]
        hin = jnp.concatenate([x1, cl], axis=-1)
        h = jnp.maximum(jnp.einsum("bnk,kh->bnh", hin, params["w1"][f])
                        + params["b1"][f], 0.0)
        st = jnp.einsum("bnh,hc->bnc", h, params["w2"][f]) + params["b2"][f]
        s = CLAMP * jnp.tanh(st[..., :C_HALF])
        t = st[..., C_HALF:]
        y2 = x2 * jnp.exp(s) + t
        ld = ld + jnp.sum(s, axis=(1, 2))
        xl = jnp.concatenate([x1, y2], axis=-1)

    y = xl.reshape(B, Hs, Ws, C).transpose(0, 3, 1, 2)
    if SPLIT:
        output, split = jnp.split(y, 2, axis=1)
    else:
        output, split = y, None
    return output, ld, split


# ----------------------------------- main --------------------------------------
if __name__ == "__main__":
    key = jax.random.PRNGKey(0)
    k_x, k_c, k_w, k_w1, k_w2 = jax.random.split(key, 5)

    # deterministic synthetic parameters (per-flow stacks)
    params = {
        "w":  (0.1 * jax.random.normal(k_w, (N_FLOWS, C, C), jnp.float32)
               + jnp.eye(C, dtype=jnp.float32)[None]),          # invertible
        "w1": 0.2 * jax.random.normal(k_w1, (N_FLOWS, C_HALF + CH_C, HIDDEN),
                                      jnp.float32),
        "b1": jnp.zeros((N_FLOWS, 1, HIDDEN), jnp.float32),
        "w2": 0.2 * jax.random.normal(k_w2, (N_FLOWS, HIDDEN, C), jnp.float32),
        "b2": jnp.zeros((N_FLOWS, 1, C), jnp.float32),
    }

    # layout: x is NCHW (B=2, C=4, H=16, W=16); c is NCHW at squeezed res (8x8)
    x = jax.random.normal(k_x, (2, CH_IN, 16, 16), jnp.float32)
    c = jax.random.normal(k_c, (2, CH_C, 8, 8), jnp.float32)

    out, log_det, split = block_forward(x, c, params)
    jax.block_until_ready((out, log_det, split))

    # Reference is fed the same bf16-quantized activations the kernel transfers
    # (the transfer-precision rounding is a bandwidth optimization; compute and
    # log-det stay f32), so the comparison validates the kernel math tightly.
    xq = x.astype(TRANSFER_DTYPE).astype(jnp.float32)
    cq = c.astype(TRANSFER_DTYPE).astype(jnp.float32)
    out_r, log_det_r, split_r = block_forward_ref(xq, cq, params)
    assert jnp.allclose(out, out_r, rtol=1e-3, atol=1e-3)
    assert jnp.allclose(split, split_r, rtol=1e-3, atol=1e-3)
    assert jnp.allclose(log_det, log_det_r, rtol=1e-3, atol=1e-2)

    # TODO(synk): PermuteFlow variant and Block.reverse are not implemented
    # (only the forward pass with InvConvFlow flows is kernelized).
    print("KERNEL_OK")
</pallas_src>

<mosaic_0001>
module attributes {stable_mosaic.version = 11 : i64} {
  func.func @block_kernel(%arg0: i32, %arg1: i32, %arg2: memref<1x16x64xbf16, #tpu.memory_space<vmem>>, %arg3: memref<1x8x64xbf16, #tpu.memory_space<vmem>>, %arg4: memref<2x48x16xf32, #tpu.memory_space<vmem>>, %arg5: memref<2x32x8xf32, #tpu.memory_space<vmem>>, %arg6: memref<2x32x1xf32, #tpu.memory_space<vmem>>, %arg7: memref<2x16x32xf32, #tpu.memory_space<vmem>>, %arg8: memref<2x16x1xf32, #tpu.memory_space<vmem>>, %arg9: memref<1x16x64xf32, #tpu.memory_space<vmem>>, %arg10: memref<1x1x64xf32, #tpu.memory_space<vmem>>) attributes {dimension_semantics = [#tpu.dimension_semantics<parallel>, #tpu.dimension_semantics<parallel>], iteration_bounds = array<i64: 2, 1>, scalar_prefetch = 0 : i64, scratch_operands = 0 : i64, tpu.core_type = #tpu.core_type<tc>, window_params = [{transform_indices = @transform_0, window_bounds = array<i64: 1, 16, 64>}, {transform_indices = @transform_1, window_bounds = array<i64: 1, 8, 64>}, {pipeline_mode = #tpu.pipeline_mode<synchronous>, transform_indices = @transform_2, window_bounds = array<i64: 2, 48, 16>}, {pipeline_mode = #tpu.pipeline_mode<synchronous>, transform_indices = @transform_3, window_bounds = array<i64: 2, 32, 8>}, {pipeline_mode = #tpu.pipeline_mode<synchronous>, transform_indices = @transform_4, window_bounds = array<i64: 2, 32, 1>}, {pipeline_mode = #tpu.pipeline_mode<synchronous>, transform_indices = @transform_5, window_bounds = array<i64: 2, 16, 32>}, {pipeline_mode = #tpu.pipeline_mode<synchronous>, transform_indices = @transform_6, window_bounds = array<i64: 2, 16, 1>}, {transform_indices = @transform_7, window_bounds = array<i64: 1, 16, 64>}, {transform_indices = @transform_8, window_bounds = array<i64: 1, 1, 64>}]} {
    %c0 = arith.constant 0 : index
    %c0_0 = arith.constant 0 : index
    %c0_1 = arith.constant 0 : index
    %0 = vector.load %arg2[%c0, %c0_0, %c0_1] : memref<1x16x64xbf16, #tpu.memory_space<vmem>>, vector<1x16x64xbf16>
    %1 = vector.shape_cast %0 : vector<1x16x64xbf16> to vector<16x64xbf16>
    %2 = arith.extf %1 : vector<16x64xbf16> to vector<16x64xf32>
    %c0_2 = arith.constant 0 : index
    %c0_3 = arith.constant 0 : index
    %c0_4 = arith.constant 0 : index
    %3 = vector.load %arg3[%c0_2, %c0_3, %c0_4] : memref<1x8x64xbf16, #tpu.memory_space<vmem>>, vector<1x8x64xbf16>
    %4 = vector.shape_cast %3 : vector<1x8x64xbf16> to vector<8x64xbf16>
    %5 = arith.extf %4 : vector<8x64xbf16> to vector<8x64xf32>
    %cst = arith.constant 0.000000e+00 : f32
    %6 = vector.broadcast %cst : f32 to vector<1x64xf32>
    %c0_5 = arith.constant 0 : index
    %c0_6 = arith.constant 0 : index
    %c0_7 = arith.constant 0 : index
    %7 = vector.load %arg4[%c0_5, %c0_6, %c0_7] : memref<2x48x16xf32, #tpu.memory_space<vmem>>, vector<1x48x16xf32>
    %8 = vector.shape_cast %7 : vector<1x48x16xf32> to vector<48x16xf32>
    %cst_8 = arith.constant dense<0.000000e+00> : vector<48x64xf32>
    %9 = tpu.matmul %8, %2, %cst_8 {dimension_numbers = #tpu.dot_dimension_numbers<[1], [0], [0], [1], [0, 0, 1, 1], [], []>} : vector<48x16xf32>, vector<16x64xf32>, vector<48x64xf32> -> vector<48x64xf32>
    %10 = vector.extract_strided_slice %9 {offsets = [16, 0], sizes = [32, 64], strides = [1, 1]} : vector<48x64xf32> to vector<32x64xf32>
    %c0_9 = arith.constant 0 : index
    %c0_10 = arith.constant 0 : index
    %c0_11 = arith.constant 0 : index
    %11 = vector.load %arg5[%c0_9, %c0_10, %c0_11] : memref<2x32x8xf32, #tpu.memory_space<vmem>>, vector<1x32x8xf32>
    %12 = vector.shape_cast %11 : vector<1x32x8xf32> to vector<32x8xf32>
    %cst_12 = arith.constant dense<0.000000e+00> : vector<32x64xf32>
    %13 = tpu.matmul %12, %5, %cst_12 {dimension_numbers = #tpu.dot_dimension_numbers<[1], [0], [0], [1], [0, 0, 1, 1], [], []>} : vector<32x8xf32>, vector<8x64xf32>, vector<32x64xf32> -> vector<32x64xf32>
    %14 = arith.addf %10, %13 : vector<32x64xf32>
    %c0_13 = arith.constant 0 : index
    %c0_14 = arith.constant 0 : index
    %c0_15 = arith.constant 0 : index
    %15 = vector.load %arg6[%c0_13, %c0_14, %c0_15] : memref<2x32x1xf32, #tpu.memory_space<vmem>>, vector<1x32x1xf32>
    %16 = vector.shape_cast %15 : vector<1x32x1xf32> to vector<32x1xf32>
    %17 = vector.broadcast %16 : vector<32x1xf32> to vector<32x64xf32>
    %18 = arith.addf %14, %17 : vector<32x64xf32>
    %cst_16 = arith.constant 0.000000e+00 : f32
    %19 = vector.broadcast %cst_16 : f32 to vector<32x64xf32>
    %20 = arith.maximumf %18, %19 : vector<32x64xf32>
    %c0_17 = arith.constant 0 : index
    %c0_18 = arith.constant 0 : index
    %c0_19 = arith.constant 0 : index
    %21 = vector.load %arg7[%c0_17, %c0_18, %c0_19] : memref<2x16x32xf32, #tpu.memory_space<vmem>>, vector<1x16x32xf32>
    %22 = vector.shape_cast %21 : vector<1x16x32xf32> to vector<16x32xf32>
    %cst_20 = arith.constant dense<0.000000e+00> : vector<16x64xf32>
    %23 = tpu.matmul %22, %20, %cst_20 {dimension_numbers = #tpu.dot_dimension_numbers<[1], [0], [0], [1], [0, 0, 1, 1], [], []>} : vector<16x32xf32>, vector<32x64xf32>, vector<16x64xf32> -> vector<16x64xf32>
    %c0_21 = arith.constant 0 : index
    %c0_22 = arith.constant 0 : index
    %c0_23 = arith.constant 0 : index
    %24 = vector.load %arg8[%c0_21, %c0_22, %c0_23] : memref<2x16x1xf32, #tpu.memory_space<vmem>>, vector<1x16x1xf32>
    %25 = vector.shape_cast %24 : vector<1x16x1xf32> to vector<16x1xf32>
    %26 = vector.broadcast %25 : vector<16x1xf32> to vector<16x64xf32>
    %27 = arith.addf %23, %26 : vector<16x64xf32>
    %28 = vector.extract_strided_slice %27 {offsets = [0, 0], sizes = [8, 64], strides = [1, 1]} : vector<16x64xf32> to vector<8x64xf32>
    %29 = math.tanh %28 : vector<8x64xf32>
    %cst_24 = arith.constant 2.000000e+00 : f32
    %30 = vector.broadcast %cst_24 : f32 to vector<8x64xf32>
    %31 = arith.mulf %30, %29 : vector<8x64xf32>
    %32 = vector.extract_strided_slice %27 {offsets = [8, 0], sizes = [8, 64], strides = [1, 1]} : vector<16x64xf32> to vector<8x64xf32>
    %33 = vector.extract_strided_slice %9 {offsets = [8, 0], sizes = [8, 64], strides = [1, 1]} : vector<48x64xf32> to vector<8x64xf32>
    %34 = math.exp %31 : vector<8x64xf32>
    %35 = arith.mulf %33, %34 : vector<8x64xf32>
    %36 = arith.addf %35, %32 : vector<8x64xf32>
    %cst_25 = arith.constant dense<0.000000e+00> : vector<64xf32>
    %37 = vector.multi_reduction <add>, %31, %cst_25 [0] : vector<8x64xf32> to vector<64xf32>
    %38 = vector.shape_cast %37 : vector<64xf32> to vector<1x64xf32>
    %39 = arith.addf %6, %38 : vector<1x64xf32>
    %40 = vector.extract_strided_slice %9 {offsets = [0, 0], sizes = [8, 64], strides = [1, 1]} : vector<48x64xf32> to vector<8x64xf32>
    %41 = tpu.concatenate %40, %36 in 0 : vector<8x64xf32>, vector<8x64xf32> -> vector<16x64xf32>
    %c1 = arith.constant 1 : index
    %c0_26 = arith.constant 0 : index
    %c0_27 = arith.constant 0 : index
    %42 = vector.load %arg4[%c1, %c0_26, %c0_27] : memref<2x48x16xf32, #tpu.memory_space<vmem>>, vector<1x48x16xf32>
    %43 = vector.shape_cast %42 : vector<1x48x16xf32> to vector<48x16xf32>
    %cst_28 = arith.constant dense<0.000000e+00> : vector<48x64xf32>
    %44 = tpu.matmul %43, %41, %cst_28 {dimension_numbers = #tpu.dot_dimension_numbers<[1], [0], [0], [1], [0, 0, 1, 1], [], []>} : vector<48x16xf32>, vector<16x64xf32>, vector<48x64xf32> -> vector<48x64xf32>
    %45 = vector.extract_strided_slice %44 {offsets = [16, 0], sizes = [32, 64], strides = [1, 1]} : vector<48x64xf32> to vector<32x64xf32>
    %c1_29 = arith.constant 1 : index
    %c0_30 = arith.constant 0 : index
    %c0_31 = arith.constant 0 : index
    %46 = vector.load %arg5[%c1_29, %c0_30, %c0_31] : memref<2x32x8xf32, #tpu.memory_space<vmem>>, vector<1x32x8xf32>
    %47 = vector.shape_cast %46 : vector<1x32x8xf32> to vector<32x8xf32>
    %cst_32 = arith.constant dense<0.000000e+00> : vector<32x64xf32>
    %48 = tpu.matmul %47, %5, %cst_32 {dimension_numbers = #tpu.dot_dimension_numbers<[1], [0], [0], [1], [0, 0, 1, 1], [], []>} : vector<32x8xf32>, vector<8x64xf32>, vector<32x64xf32> -> vector<32x64xf32>
    %49 = arith.addf %45, %48 : vector<32x64xf32>
    %c1_33 = arith.constant 1 : index
    %c0_34 = arith.constant 0 : index
    %c0_35 = arith.constant 0 : index
    %50 = vector.load %arg6[%c1_33, %c0_34, %c0_35] : memref<2x32x1xf32, #tpu.memory_space<vmem>>, vector<1x32x1xf32>
    %51 = vector.shape_cast %50 : vector<1x32x1xf32> to vector<32x1xf32>
    %52 = vector.broadcast %51 : vector<32x1xf32> to vector<32x64xf32>
    %53 = arith.addf %49, %52 : vector<32x64xf32>
    %cst_36 = arith.constant 0.000000e+00 : f32
    %54 = vector.broadcast %cst_36 : f32 to vector<32x64xf32>
    %55 = arith.maximumf %53, %54 : vector<32x64xf32>
    %c1_37 = arith.constant 1 : index
    %c0_38 = arith.constant 0 : index
    %c0_39 = arith.constant 0 : index
    %56 = vector.load %arg7[%c1_37, %c0_38, %c0_39] : memref<2x16x32xf32, #tpu.memory_space<vmem>>, vector<1x16x32xf32>
    %57 = vector.shape_cast %56 : vector<1x16x32xf32> to vector<16x32xf32>
    %cst_40 = arith.constant dense<0.000000e+00> : vector<16x64xf32>
    %58 = tpu.matmul %57, %55, %cst_40 {dimension_numbers = #tpu.dot_dimension_numbers<[1], [0], [0], [1], [0, 0, 1, 1], [], []>} : vector<16x32xf32>, vector<32x64xf32>, vector<16x64xf32> -> vector<16x64xf32>
    %c1_41 = arith.constant 1 : index
    %c0_42 = arith.constant 0 : index
    %c0_43 = arith.constant 0 : index
    %59 = vector.load %arg8[%c1_41, %c0_42, %c0_43] : memref<2x16x1xf32, #tpu.memory_space<vmem>>, vector<1x16x1xf32>
    %60 = vector.shape_cast %59 : vector<1x16x1xf32> to vector<16x1xf32>
    %61 = vector.broadcast %60 : vector<16x1xf32> to vector<16x64xf32>
    %62 = arith.addf %58, %61 : vector<16x64xf32>
    %63 = vector.extract_strided_slice %62 {offsets = [0, 0], sizes = [8, 64], strides = [1, 1]} : vector<16x64xf32> to vector<8x64xf32>
    %64 = math.tanh %63 : vector<8x64xf32>
    %cst_44 = arith.constant 2.000000e+00 : f32
    %65 = vector.broadcast %cst_44 : f32 to vector<8x64xf32>
    %66 = arith.mulf %65, %64 : vector<8x64xf32>
    %67 = vector.extract_strided_slice %62 {offsets = [8, 0], sizes = [8, 64], strides = [1, 1]} : vector<16x64xf32> to vector<8x64xf32>
    %68 = vector.extract_strided_slice %44 {offsets = [8, 0], sizes = [8, 64], strides = [1, 1]} : vector<48x64xf32> to vector<8x64xf32>
    %69 = math.exp %66 : vector<8x64xf32>
    %70 = arith.mulf %68, %69 : vector<8x64xf32>
    %71 = arith.addf %70, %67 : vector<8x64xf32>
    %cst_45 = arith.constant dense<0.000000e+00> : vector<64xf32>
    %72 = vector.multi_reduction <add>, %66, %cst_45 [0] : vector<8x64xf32> to vector<64xf32>
    %73 = vector.shape_cast %72 : vector<64xf32> to vector<1x64xf32>
    %74 = arith.addf %39, %73 : vector<1x64xf32>
    %75 = vector.extract_strided_slice %44 {offsets = [0, 0], sizes = [8, 64], strides = [1, 1]} : vector<48x64xf32> to vector<8x64xf32>
    %76 = tpu.concatenate %75, %71 in 0 : vector<8x64xf32>, vector<8x64xf32> -> vector<16x64xf32>
    %c0_46 = arith.constant 0 : index
    %c0_47 = arith.constant 0 : index
    %c0_48 = arith.constant 0 : index
    %77 = vector.load %arg9[%c0_46, %c0_47, %c0_48] : memref<1x16x64xf32, #tpu.memory_space<vmem>>, vector<1x16x64xf32>
    %78 = vector.shape_cast %77 : vector<1x16x64xf32> to vector<16x64xf32>
    %79 = vector.shape_cast %76 : vector<16x64xf32> to vector<1x16x64xf32>
    tpu.vector_store %arg9[%c0_46, %c0_47, %c0_48], %79 {strides = array<i32>} : memref<1x16x64xf32, #tpu.memory_space<vmem>>, vector<1x16x64xf32>,
    %c0_49 = arith.constant 0 : index
    %c0_50 = arith.constant 0 : index
    %c0_51 = arith.constant 0 : index
    %80 = vector.load %arg10[%c0_49, %c0_50, %c0_51] : memref<1x1x64xf32, #tpu.memory_space<vmem>>, vector<1x1x64xf32>
    %81 = vector.shape_cast %80 : vector<1x1x64xf32> to vector<1x64xf32>
    %82 = vector.shape_cast %74 : vector<1x64xf32> to vector<1x1x64xf32>
    tpu.vector_store %arg10[%c0_49, %c0_50, %c0_51], %82 {strides = array<i32>} : memref<1x1x64xf32, #tpu.memory_space<vmem>>, vector<1x1x64xf32>,
    return
  }
  func.func @transform_0(%arg0: i32, %arg1: i32) -> (i32, i32, i32) {
    %c0_i32 = arith.constant 0 : i32
    %c0_i32_0 = arith.constant 0 : i32
    return %arg0, %c0_i32, %arg1 : i32, i32, i32
  }
  func.func @transform_1(%arg0: i32, %arg1: i32) -> (i32, i32, i32) {
    %c0_i32 = arith.constant 0 : i32
    %c0_i32_0 = arith.constant 0 : i32
    return %arg0, %c0_i32, %arg1 : i32, i32, i32
  }
  func.func @transform_2(%arg0: i32, %arg1: i32) -> (i32, i32, i32) {
    %c0_i32 = arith.constant 0 : i32
    %c0_i32_0 = arith.constant 0 : i32
    %c0_i32_1 = arith.constant 0 : i32
    %c0_i32_2 = arith.constant 0 : i32
    return %c0_i32, %c0_i32_0, %c0_i32_1 : i32, i32, i32
  }
  func.func @transform_3(%arg0: i32, %arg1: i32) -> (i32, i32, i32) {
    %c0_i32 = arith.constant 0 : i32
    %c0_i32_0 = arith.constant 0 : i32
    %c0_i32_1 = arith.constant 0 : i32
    %c0_i32_2 = arith.constant 0 : i32
    return %c0_i32, %c0_i32_0, %c0_i32_1 : i32, i32, i32
  }
  func.func @transform_4(%arg0: i32, %arg1: i32) -> (i32, i32, i32) {
    %c0_i32 = arith.constant 0 : i32
    %c0_i32_0 = arith.constant 0 : i32
    %c0_i32_1 = arith.constant 0 : i32
    %c0_i32_2 = arith.constant 0 : i32
    return %c0_i32, %c0_i32_0, %c0_i32_1 : i32, i32, i32
  }
  func.func @transform_5(%arg0: i32, %arg1: i32) -> (i32, i32, i32) {
    %c0_i32 = arith.constant 0 : i32
    %c0_i32_0 = arith.constant 0 : i32
    %c0_i32_1 = arith.constant 0 : i32
    %c0_i32_2 = arith.constant 0 : i32
    return %c0_i32, %c0_i32_0, %c0_i32_1 : i32, i32, i32
  }
  func.func @transform_6(%arg0: i32, %arg1: i32) -> (i32, i32, i32) {
    %c0_i32 = arith.constant 0 : i32
    %c0_i32_0 = arith.constant 0 : i32
    %c0_i32_1 = arith.constant 0 : i32
    %c0_i32_2 = arith.constant 0 : i32
    return %c0_i32, %c0_i32_0, %c0_i32_1 : i32, i32, i32
  }
  func.func @transform_7(%arg0: i32, %arg1: i32) -> (i32, i32, i32) {
    %c0_i32 = arith.constant 0 : i32
    %c0_i32_0 = arith.constant 0 : i32
    return %arg0, %c0_i32, %arg1 : i32, i32, i32
  }
  func.func @transform_8(%arg0: i32, %arg1: i32) -> (i32, i32, i32) {
    %c0_i32 = arith.constant 0 : i32
    %c0_i32_0 = arith.constant 0 : i32
    return %arg0, %c0_i32, %arg1 : i32, i32, i32
  }
}

</mosaic_0001>

<llo_original>
// kernel: tpu_custom_call.1
$region0: #{tpu_custom_call.1}
  #allocation0 [shape = 'u32[]', space=smem, size = 0x4, offset = 0x4, fixed_abs, tag = 'smem constant byte address 0x4 - core index']
  #allocation1 [shape = 'u32[144,128]{1,0:T(1,128)}', space=vmem, size = 0x12000, scoped, tag = 'internal scratch']
  %s0 = inlined_call_operand.vmem [shape: bf16[2,16,64], index: 0, kind: input, shape index: {}]
  %s1 = inlined_call_operand.vmem [shape: bf16[2,8,64], index: 1, kind: input, shape index: {}]
  %s2 = inlined_call_operand.vmem [shape: f32[2,48,16], index: 2, kind: input, shape index: {}]
  %s3 = inlined_call_operand.vmem [shape: f32[2,32,8], index: 3, kind: input, shape index: {}]
  %s4 = inlined_call_operand.vmem [shape: f32[2,32,1], index: 4, kind: input, shape index: {}]
  %s5 = inlined_call_operand.vmem [shape: f32[2,16,32], index: 5, kind: input, shape index: {}]
  %s6 = inlined_call_operand.vmem [shape: f32[2,16,1], index: 6, kind: input, shape index: {}]
  %s7 = inlined_call_operand.hbm [shape: f32[2,16,64], index: 7, kind: output, shape index: {0}]
  %s8 = inlined_call_operand.hbm [shape: f32[2,1,64], index: 8, kind: output, shape index: {1}]
  %9 = xla_tuple %s7, %s8
  %s10 = sld [smem:[#allocation0]]
  $region69: #{tpu_custom_call.1} parent=0
    _
  %s12 = ssub.s32 1, %s10
  %s13 = scalar_select 0, %s12, %s10
  $region1: #{tpu_custom_call.1} parent=0
    #allocation2 [shape = 'u8[16384]{0}', space=vmem, size = 0x4000, scoped, tag = 'output window, operand 0']
    #allocation3 [shape = 's32[2]{0}', space=sflag, size = 0x8, scoped, tag = 'scoped memory for tpu_custom_call.1']
    #allocation4 [shape = 'u8[1024]{0}', space=vmem, size = 0x400, scoped, tag = 'output window, operand 1']
    #allocation5 [shape = 's32[2]{0}', space=sflag, size = 0x8, scoped, tag = 'scoped memory for tpu_custom_call.1']
    %14 = vsyncpa [#allocation3], 0
    %s15 = scalar_lea.sflag [#allocation3], 1
    %16 = vsyncpa %s15, 0
    %17 = vsyncpa [#allocation5], 0
    %s18 = scalar_lea.sflag [#allocation5], 1
    %19 = vsyncpa %s18, 0
    loop: start=0, step=1, limit=4
    $region2: #{tpu_custom_call.1} parent=1 // loop_pre_header
      _
    $region3: #{tpu_custom_call.1} parent=1 // loop_header
      %s21 = sphi 0, %s25
      %p22 = scmp.ge.s32.totalorder %s21, 4
      %s28 = sphi 0, %s40
      %s29 = sphi 0, %s36
      %s30 = sphi 0, %s28
      %s31 = sphi 0, %s29
      %s32 = sphi 0, %s30
      %s33 = sphi 0, %s31
      %s45 = sphi 0, %s47
      %s48 = sphi 0, %s45
      %s49 = sphi 0, %s48
      %s65 = sphi 0, %s49
      %s73 = sphi 0, %s75
      %s76 = sphi 0, %s73
      %s77 = sphi 0, %s76
      %s93 = sphi 0, %s77
      %s97 = sphi 0, %s97
      %s99 = sphi 0, %s97
      %s100 = sphi 0, %s99
      %s114 = sphi 0, %s100
      %s118 = sphi 0, %s118
      %s120 = sphi 0, %s118
      %s121 = sphi 0, %s120
      %s135 = sphi 0, %s121
      %s139 = sphi 0, %s139
      %s141 = sphi 0, %s139
      %s142 = sphi 0, %s141
      %s156 = sphi 0, %s142
      %s160 = sphi 0, %s160
      %s162 = sphi 0, %s160
      %s163 = sphi 0, %s162
      %s177 = sphi 0, %s163
      %s181 = sphi 0, %s181
      %s183 = sphi 0, %s181
      %s184 = sphi 0, %s183
      %s198 = sphi 0, %s184
      %s206 = sphi 0, %s208
      %s209 = sphi 0, %s206
      %s210 = sphi 0, %s209
      %s226 = sphi 0, %s210
      %s234 = sphi 0, %s236
      %s237 = sphi 0, %s234
      %s238 = sphi 0, %s237
      %s254 = sphi 0, %s238
    $region4: #{tpu_custom_call.1} parent=1 // loop_header_branch
      %24 = sbr.rel (%p22) target = $region8
    $region5: #{tpu_custom_call.1} parent=1 // loop_body
      %s26 = ssub.s32 %s21, 1
      %s27 = ssub.s32 %s21, 2
      %s34 = sadd.s32 1, %s29
      %p35 = scmp.ge.s32.totalorder %s34, 1
      %s36 = scalar_select %p35, 0, %s34
      %s37 = sadd.s32 1, %s28
      %s38 = scalar_select %p35, %s37, %s28
      %p39 = scmp.ge.s32.totalorder %s38, 2
      %s40 = scalar_select %p39, 0, %s38
      %s41 = ssub.s32 %s28, %s40
      %s42 = ssub.s32 %s29, %s36
      %s43 = sor.u32 %s41, %s42
      %p44 = scmp.eq.s32.totalorder %s43, 0
      %s46 = sadd.s32 %s45, 1
      %s47 = scalar_select %p44, %s45, %s46
      %p50 = pneg %p44
      %p51 = scmp.eq.s32.totalorder %s21, 1
      %p52 = por %p50, %p51
      %p53 = scmp.ne.s32.totalorder %s45, %s48
      %p54 = scmp.eq.s32.totalorder %s21, 0
      %p55 = por %p53, %p54
      %p56 = scmp.ne.s32.totalorder %s45, %s48
      %p57 = scmp.eq.s32.totalorder %s26, 1
      %p58 = por %p56, %p57
      %p59 = scmp.ne.s32.totalorder %s48, %s49
      %p60 = scmp.eq.s32.totalorder %s26, 0
      %p61 = por %p59, %p60
      %p62 = scmp.ne.s32.totalorder %s48, %s49
      %p63 = scmp.eq.s32.totalorder %s27, 1
      %p64 = por %p62, %p63
      %p66 = scmp.ne.s32.totalorder %s49, %s65
      %p67 = scmp.eq.s32.totalorder %s27, 0
      %p68 = por %p66, %p67
      %s69 = ssub.s32 %s28, %s40
      %s70 = ssub.s32 %s29, %s36
      %s71 = sor.u32 %s69, %s70
      %p72 = scmp.eq.s32.totalorder %s71, 0
      %s74 = sadd.s32 %s73, 1
      %s75 = scalar_select %p72, %s73, %s74
      %p78 = pneg %p72
      %p79 = scmp.eq.s32.totalorder %s21, 1
      %p80 = por %p78, %p79
      %p81 = scmp.ne.s32.totalorder %s73, %s76
      %p82 = scmp.eq.s32.totalorder %s21, 0
      %p83 = por %p81, %p82
      %p84 = scmp.ne.s32.totalorder %s73, %s76
      %p85 = scmp.eq.s32.totalorder %s26, 1
      %p86 = por %p84, %p85
      %p87 = scmp.ne.s32.totalorder %s76, %s77
      %p88 = scmp.eq.s32.totalorder %s26, 0
      %p89 = por %p87, %p88
      %p90 = scmp.ne.s32.totalorder %s76, %s77
      %p91 = scmp.eq.s32.totalorder %s27, 1
      %p92 = por %p90, %p91
      %p94 = scmp.ne.s32.totalorder %s77, %s93
      %p95 = scmp.eq.s32.totalorder %s27, 0
      %p96 = por %p94, %p95
      %s98 = sadd.s32 %s97, 1
      %p101 = scmp.eq.s32.totalorder %s21, 1
      %p102 = scmp.ne.s32.totalorder %s97, %s99
      %p103 = scmp.eq.s32.totalorder %s21, 0
      %p104 = por %p102, %p103
      %p105 = scmp.ne.s32.totalorder %s97, %s99
      %p106 = scmp.eq.s32.totalorder %s26, 1
      %p107 = por %p105, %p106
      %p108 = scmp.ne.s32.totalorder %s99, %s100
      %p109 = scmp.eq.s32.totalorder %s26, 0
      %p110 = por %p108, %p109
      %p111 = scmp.ne.s32.totalorder %s99, %s100
      %p112 = scmp.eq.s32.totalorder %s27, 1
      %p113 = por %p111, %p112
      %p115 = scmp.ne.s32.totalorder %s100, %s114
      %p116 = scmp.eq.s32.totalorder %s27, 0
      %p117 = por %p115, %p116
      %s119 = sadd.s32 %s118, 1
      %p122 = scmp.eq.s32.totalorder %s21, 1
      %p123 = scmp.ne.s32.totalorder %s118, %s120
      %p124 = scmp.eq.s32.totalorder %s21, 0
      %p125 = por %p123, %p124
      %p126 = scmp.ne.s32.totalorder %s118, %s120
      %p127 = scmp.eq.s32.totalorder %s26, 1
      %p128 = por %p126, %p127
      %p129 = scmp.ne.s32.totalorder %s120, %s121
      %p130 = scmp.eq.s32.totalorder %s26, 0
      %p131 = por %p129, %p130
      %p132 = scmp.ne.s32.totalorder %s120, %s121
      %p133 = scmp.eq.s32.totalorder %s27, 1
      %p134 = por %p132, %p133
      %p136 = scmp.ne.s32.totalorder %s121, %s135
      %p137 = scmp.eq.s32.totalorder %s27, 0
      %p138 = por %p136, %p137
      %s140 = sadd.s32 %s139, 1
      %p143 = scmp.eq.s32.totalorder %s21, 1
      %p144 = scmp.ne.s32.totalorder %s139, %s141
      %p145 = scmp.eq.s32.totalorder %s21, 0
      %p146 = por %p144, %p145
      %p147 = scmp.ne.s32.totalorder %s139, %s141
      %p148 = scmp.eq.s32.totalorder %s26, 1
      %p149 = por %p147, %p148
      %p150 = scmp.ne.s32.totalorder %s141, %s142
      %p151 = scmp.eq.s32.totalorder %s26, 0
      %p152 = por %p150, %p151
      %p153 = scmp.ne.s32.totalorder %s141, %s142
      %p154 = scmp.eq.s32.totalorder %s27, 1
      %p155 = por %p153, %p154
      %p157 = scmp.ne.s32.totalorder %s142, %s156
      %p158 = scmp.eq.s32.totalorder %s27, 0
      %p159 = por %p157, %p158
      %s161 = sadd.s32 %s160, 1
      %p164 = scmp.eq.s32.totalorder %s21, 1
      %p165 = scmp.ne.s32.totalorder %s160, %s162
      %p166 = scmp.eq.s32.totalorder %s21, 0
      %p167 = por %p165, %p166
      %p168 = scmp.ne.s32.totalorder %s160, %s162
      %p169 = scmp.eq.s32.totalorder %s26, 1
      %p170 = por %p168, %p169
      %p171 = scmp.ne.s32.totalorder %s162, %s163
      %p172 = scmp.eq.s32.totalorder %s26, 0
      %p173 = por %p171, %p172
      %p174 = scmp.ne.s32.totalorder %s162, %s163
      %p175 = scmp.eq.s32.totalorder %s27, 1
      %p176 = por %p174, %p175
      %p178 = scmp.ne.s32.totalorder %s163, %s177
      %p179 = scmp.eq.s32.totalorder %s27, 0
      %p180 = por %p178, %p179
      %s182 = sadd.s32 %s181, 1
      %p185 = scmp.eq.s32.totalorder %s21, 1
      %p186 = scmp.ne.s32.totalorder %s181, %s183
      %p187 = scmp.eq.s32.totalorder %s21, 0
      %p188 = por %p186, %p187
      %p189 = scmp.ne.s32.totalorder %s181, %s183
      %p190 = scmp.eq.s32.totalorder %s26, 1
      %p191 = por %p189, %p190
      %p192 = scmp.ne.s32.totalorder %s183, %s184
      %p193 = scmp.eq.s32.totalorder %s26, 0
      %p194 = por %p192, %p193
      %p195 = scmp.ne.s32.totalorder %s183, %s184
      %p196 = scmp.eq.s32.totalorder %s27, 1
      %p197 = por %p195, %p196
      %p199 = scmp.ne.s32.totalorder %s184, %s198
      %p200 = scmp.eq.s32.totalorder %s27, 0
      %p201 = por %p199, %p200
      %s202 = ssub.s32 %s28, %s40
      %s203 = ssub.s32 %s29, %s36
      %s204 = sor.u32 %s202, %s203
      %p205 = scmp.eq.s32.totalorder %s204, 0
      %s207 = sadd.s32 %s206, 1
      %s208 = scalar_select %p205, %s206, %s207
      %p211 = pneg %p205
      %p212 = scmp.eq.s32.totalorder %s21, 1
      %p213 = por %p211, %p212
      %p214 = scmp.ne.s32.totalorder %s206, %s209
      %p215 = scmp.eq.s32.totalorder %s21, 0
      %p216 = por %p214, %p215
      %p217 = scmp.ne.s32.totalorder %s206, %s209
      %p218 = scmp.eq.s32.totalorder %s26, 1
      %p219 = por %p217, %p218
      %p220 = scmp.ne.s32.totalorder %s209, %s210
      %p221 = scmp.eq.s32.totalorder %s26, 0
      %p222 = por %p220, %p221
      %p223 = scmp.ne.s32.totalorder %s209, %s210
      %p224 = scmp.eq.s32.totalorder %s27, 1
      %p225 = por %p223, %p224
      %p227 = scmp.ne.s32.totalorder %s210, %s226
      %p228 = scmp.eq.s32.totalorder %s27, 0
      %p229 = por %p227, %p228
      %s230 = ssub.s32 %s28, %s40
      %s231 = ssub.s32 %s29, %s36
      %s232 = sor.u32 %s230, %s231
      %p233 = scmp.eq.s32.totalorder %s232, 0
      %s235 = sadd.s32 %s234, 1
      %s236 = scalar_select %p233, %s234, %s235
      %p239 = pneg %p233
      %p240 = scmp.eq.s32.totalorder %s21, 1
      %p241 = por %p239, %p240
      %p242 = scmp.ne.s32.totalorder %s234, %s237
      %p243 = scmp.eq.s32.totalorder %s21, 0
      %p244 = por %p242, %p243
      %p245 = scmp.ne.s32.totalorder %s234, %s237
      %p246 = scmp.eq.s32.totalorder %s26, 1
      %p247 = por %p245, %p246
      %p248 = scmp.ne.s32.totalorder %s237, %s238
      %p249 = scmp.eq.s32.totalorder %s26, 0
      %p250 = por %p248, %p249
      %p251 = scmp.ne.s32.totalorder %s237, %s238
      %p252 = scmp.eq.s32.totalorder %s27, 1
      %p253 = por %p251, %p252
      %p255 = scmp.ne.s32.totalorder %s238, %s254
      %p256 = scmp.eq.s32.totalorder %s27, 0
      %p257 = por %p255, %p256
      %p258 = scmp.le.s32.totalorder 1, %s21
      %p259 = scmp.lt.s32.totalorder %s21, 3
      %p260 = pnand %p258, %p259
      %p261 = pneg %p260
      // Predicated region
      $region9: #{tpu_custom_call.1} parent=5 // pred_check
        _
      $region10: #{tpu_custom_call.1} parent=5 // pred_check_branch
        %263 = sbr.rel (%p260) target = $region12
      $region11: #{tpu_custom_call.1} parent=5 // pred_region
        %s264 = ssub.s32 %s21, 1
        // Predicated region
        $region13: #{tpu_custom_call.1} parent=11 // pred_check
          %p265 = pneg %p110
        $region14: #{tpu_custom_call.1} parent=11 // pred_check_branch
          %267 = sbr.rel (%p265) target = $region16
        $region15: #{tpu_custom_call.1} parent=11 // pred_region
          _
        $region16: #{tpu_custom_call.1} parent=11 // pred_fallthru
          _
        // Predicated region
        $region17: #{tpu_custom_call.1} parent=11 // pred_check
          %p268 = pneg %p131
        $region18: #{tpu_custom_call.1} parent=11 // pred_check_branch
          %270 = sbr.rel (%p268) target = $region20
        $region19: #{tpu_custom_call.1} parent=11 // pred_region
          _
        $region20: #{tpu_custom_call.1} parent=11 // pred_fallthru
          _
        // Predicated region
        $region21: #{tpu_custom_call.1} parent=11 // pred_check
          %p271 = pneg %p152
        $region22: #{tpu_custom_call.1} parent=11 // pred_check_branch
          %273 = sbr.rel (%p271) target = $region24
        $region23: #{tpu_custom_call.1} parent=11 // pred_region
          _
        $region24: #{tpu_custom_call.1} parent=11 // pred_fallthru
          _
        // Predicated region
        $region25: #{tpu_custom_call.1} parent=11 // pred_check
          %p274 = pneg %p173
        $region26: #{tpu_custom_call.1} parent=11 // pred_check_branch
          %276 = sbr.rel (%p274) target = $region28
        $region27: #{tpu_custom_call.1} parent=11 // pred_region
          _
        $region28: #{tpu_custom_call.1} parent=11 // pred_fallthru
          _
        // Predicated region
        $region29: #{tpu_custom_call.1} parent=11 // pred_check
          %p277 = pneg %p194
        $region30: #{tpu_custom_call.1} parent=11 // pred_check_branch
          %279 = sbr.rel (%p277) target = $region32
        $region31: #{tpu_custom_call.1} parent=11 // pred_region
          _
        $region32: #{tpu_custom_call.1} parent=11 // pred_fallthru
          _
      $region12: #{tpu_custom_call.1} parent=5 // pred_fallthru
        _
      %p280 = scmp.lt.s32.totalorder %s21, 2
      // Predicated region
      $region33: #{tpu_custom_call.1} parent=5 // pred_check
        %p281 = pneg %p280
      $region34: #{tpu_custom_call.1} parent=5 // pred_check_branch
        %283 = sbr.rel (%p281) target = $region36
      $region35: #{tpu_custom_call.1} parent=5 // pred_region
        // Predicated region
        $region37: #{tpu_custom_call.1} parent=35 // pred_check
          %p284 = pneg %p55
        $region38: #{tpu_custom_call.1} parent=35 // pred_check_branch
          %286 = sbr.rel (%p284) target = $region40
        $region39: #{tpu_custom_call.1} parent=35 // pred_region
          %p287 = scmp.lt.s32.totalorder %s28, 1
          %s288 = scalar_select %p287, %s28, 1
          %p289 = scmp.lt.s32.totalorder %s29, 0
          %s290 = scalar_select %p289, %s29, 0
          %s291 = smul.addr %s288, 2
          %s292 = sadd.s32 %s290, %s291
          %s293 = smul.addr %s292, 4
          %s294 = scalar_lea.vmem %s0, %s293
        $region40: #{tpu_custom_call.1} parent=35 // pred_fallthru
          _
        // Predicated region
        $region41: #{tpu_custom_call.1} parent=35 // pred_check
          %p295 = pneg %p83
        $region42: #{tpu_custom_call.1} parent=35 // pred_check_branch
          %297 = sbr.rel (%p295) target = $region44
        $region43: #{tpu_custom_call.1} parent=35 // pred_region
          %p298 = scmp.lt.s32.totalorder %s28, 1
          %s299 = scalar_select %p298, %s28, 1
          %p300 = scmp.lt.s32.totalorder %s29, 0
          %s301 = scalar_select %p300, %s29, 0
          %s302 = sadd.s32 %s301, %s299
          %s303 = smul.addr %s302, 4
          %s304 = scalar_lea.vmem %s1, %s303
        $region44: #{tpu_custom_call.1} parent=35 // pred_fallthru
          _
      $region36: #{tpu_custom_call.1} parent=5 // pred_fallthru
        _
      %p305 = scmp.le.s32.totalorder 1, %s21
      %p306 = scmp.lt.s32.totalorder %s21, 3
      %p307 = pnand %p305, %p306
      %p308 = pneg %p307
      // Predicated region
      $region45: #{tpu_custom_call.1} parent=5 // pred_check
        _
      $region46: #{tpu_custom_call.1} parent=5 // pred_check_branch
        %310 = sbr.rel (%p307) target = $region48
      $region47: #{tpu_custom_call.1} parent=5 // pred_region
        %s311 = ssub.s32 %s21, 1
        %p312 = scmp.lt.s32.totalorder %s30, 1
        %s313 = scalar_select %p312, %s30, 1
        %p314 = scmp.lt.s32.totalorder %s31, 0
        %s315 = scalar_select %p314, %s31, 0
        %s316 = smul.addr %s313, 2
        %s317 = sadd.s32 %s315, %s316
        %s318 = smul.addr %s317, 4
        %s319 = scalar_lea.vmem %s0, %s318
        %p320 = pneg %p61
        %p321 = pneg %p58
        %p322 = scmp.lt.s32.totalorder %s30, 1
        %s323 = scalar_select %p322, %s30, 1
        %p324 = scmp.lt.s32.totalorder %s31, 0
        %s325 = scalar_select %p324, %s31, 0
        %s326 = sadd.s32 %s325, %s323
        %s327 = smul.addr %s326, 4
        %s328 = scalar_lea.vmem %s1, %s327
        %p329 = pneg %p89
        %p330 = pneg %p86
        %p331 = pneg %p110
        %p332 = pneg %p107
        %p333 = pneg %p131
        %p334 = pneg %p128
        %p335 = pneg %p152
        %p336 = pneg %p149
        %p337 = pneg %p173
        %p338 = pneg %p170
        %p339 = pneg %p194
        %p340 = pneg %p191
        %p341 = pneg %p222
        %p342 = pneg %p219
        %s343 = sand.u32 %s209, 1
        %s344 = scalar_lea.sflag [#allocation3], %s343
        %s345 = sand.u32 %s209, 1
        %s346 = smul.addr %s345, 16
        %s347 = scalar_lea.vmem [#allocation2], %s346
        %p348 = pneg %p250
        %p349 = pneg %p247
        %s350 = sand.u32 %s237, 1
        %s351 = scalar_lea.sflag [#allocation5], %s350
        %s352 = sand.u32 %s237, 1
        %s353 = scalar_lea.vmem [#allocation4], %s352
        %p354 = scmp.lt.s32.totalorder %s30, 1
        %s355 = scalar_select %p354, %s30, 1
        %p356 = scmp.lt.s32.totalorder %s31, 0
        %s357 = scalar_select %p356, %s31, 0
        %s358 = smul.addr %s355, 2
        %s359 = sadd.s32 %s357, %s358
        %s360 = smul.addr %s359, 4
        %s361 = scalar_lea.vmem %s0, %s360
        %p362 = scmp.lt.s32.totalorder %s30, 1
        %s363 = scalar_select %p362, %s30, 1
        %p364 = scmp.lt.s32.totalorder %s31, 0
        %s365 = scalar_select %p364, %s31, 0
        %s366 = sadd.s32 %s365, %s363
        %s367 = smul.addr %s366, 4
        %s368 = scalar_lea.vmem %s1, %s367
        %v369 = vld [vmem:[%s361] sm:$0xf]
        %v370 = vld [vmem:[%s361 + $0x4] sm:$0xf]
        %v371 = vunpack.c.l.bf16 %v369
        %v372 = vunpack.c.l.bf16 %v370
        %v373 = vld [vmem:[%s368] sm:$0xf]
        %v374 = vunpack.c.l.bf16 %v373
        %v375 = vld [vmem:[%s2] sm:$0xff]
        %v376 = vld [vmem:[%s2 + $0x8] sm:$0xff]
        %v377 = vld [vmem:[%s2 + $0x10] sm:$0xff]
        %v378 = vld [vmem:[%s2 + $0x18] sm:$0xff]
        %v379 = vld [vmem:[%s2 + $0x20] sm:$0xff]
        %v380 = vld [vmem:[%s2 + $0x28] sm:$0xff]
        %vm381 = vcmask 130048
        %v383 = vsel %vm381, %v375, 0
        %v386 = vsel %vm381, %v376, 0
        %v389 = vsel %vm381, %v377, 0
        %v392 = vsel %vm381, %v378, 0
        %v395 = vsel %vm381, %v379, 0
        %v398 = vsel %vm381, %v380, 0
        %400 = vmatprep.subr.mxu0 0.0
        %401 = vmatpush1.msra.mxu0 %v371
        %402 = vmatprep.subr.mxu0 0.0
        %403 = vmatpush1.msra.mxu0 %v372
        %404 = vmatprep.subr.mxu0 0.0
        %405 = vmatpush1.msra.mxu0 0.0
        %406 = vmatprep.subr.mxu0 0.0
        %407 = vmatpush1.msra.mxu0 0.0
        %408 = vmatprep.subr.mxu0 0.0
        %409 = vmatpush1.msra.mxu0 0.0
        %410 = vmatprep.subr.mxu0 0.0
        %411 = vmatpush1.msra.mxu0 0.0
        %412 = vmatprep.subr.mxu0 0.0
        %413 = vmatpush1.msra.mxu0 0.0
        %414 = vmatprep.subr.mxu0 0.0
        %415 = vmatpush1.msra.mxu0 0.0
        %416 = vmatprep.subr.mxu0 0.0
        %417 = vmatpush1.msra.mxu0 0.0
        %418 = vmatprep.subr.mxu0 0.0
        %419 = vmatpush1.msra.mxu0 0.0
        %420 = vmatprep.subr.mxu0 0.0
        %421 = vmatpush1.msra.mxu0 0.0
        %422 = vmatprep.subr.mxu0 0.0
        %423 = vmatpush1.msra.mxu0 0.0
        %424 = vmatprep.subr.mxu0 0.0
        %425 = vmatpush1.msra.mxu0 0.0
        %426 = vmatprep.subr.mxu0 0.0
        %427 = vmatpush1.msra.mxu0 0.0
        %428 = vmatprep.subr.mxu0 0.0
        %429 = vmatpush1.msra.mxu0 0.0
        %430 = vmatprep.subr.mxu0 0.0
        %431 = vmatpush1.msra.mxu0 0.0
        %432 = vmatprep.subr.mxu0 0.0
        %433 = vmatpush1.msra.mxu0 0.0
        %434 = vmatprep.subr.mxu0 0.0
        %435 = vmatpush1.msra.mxu0 0.0
        %436 = vmatprep.subr.mxu0 0.0
        %437 = vmatpush1.msra.mxu0 0.0
        %438 = vmatprep.subr.mxu0 0.0
        %439 = vmatpush1.msra.mxu0 0.0
        %440 = vmatprep.subr.mxu0 0.0
        %441 = vmatpush1.msra.mxu0 0.0
        %442 = vmatprep.subr.mxu0 0.0
        %443 = vmatpush1.msra.mxu0 0.0
        %444 = vmatprep.subr.mxu0 0.0
        %445 = vmatpush1.msra.mxu0 0.0
        %446 = vmatprep.subr.mxu0 0.0
        %447 = vmatpush1.msra.mxu0 0.0
        %448 = vmatprep.subr.mxu0 0.0
        %449 = vmatpush1.msra.mxu0 0.0
        %450 = vmatprep.subr.mxu0 0.0
        %451 = vmatpush1.msra.mxu0 0.0
        %452 = vmatprep.subr.mxu0 0.0
        %453 = vmatpush1.msra.mxu0 0.0
        %454 = vmatprep.subr.mxu0 0.0
        %455 = vmatpush1.msra.mxu0 0.0
        %456 = vmatprep.subr.mxu0 0.0
        %457 = vmatpush1.msra.mxu0 0.0
        %458 = vmatprep.subr.mxu0 0.0
        %459 = vmatpush1.msra.mxu0 0.0
        %460 = vmatprep.subr.mxu0 0.0
        %461 = vmatpush1.msra.mxu0 0.0
        %462 = vmatprep.subr.mxu0 0.0
        %463 = vmatpush1.msra.mxu0 0.0
        %464 = vmatprep.mubr.f32.mxu0 0.0
        %465 = vmatmul.mubr.f32.gmra.mrb[0].mxu0 %v383
        %v466 = vpop.f32.mrb[0].mxu0
        %v467 = vadd.f32 0.0, %v466
        %v468 = vpop.f32.mrb[0].mxu0
        %469 = vmatprep.mubr.f32.mxu0 0.0
        %470 = vmatmul.mubr.f32.gmra.mrb[0].mxu0 %v386
        %v471 = vpop.f32.mrb[0].mxu0
        %v472 = vadd.f32 0.0, %v471
        %v473 = vpop.f32.mrb[0].mxu0
        %474 = vmatprep.mubr.f32.mxu0 0.0
        %475 = vmatmul.mubr.f32.gmra.mrb[0].mxu0 %v389
        %v476 = vpop.f32.mrb[0].mxu0
        %v477 = vadd.f32 0.0, %v476
        %v478 = vpop.f32.mrb[0].mxu0
        %479 = vmatprep.mubr.f32.mxu0 0.0
        %480 = vmatmul.mubr.f32.gmra.mrb[0].mxu0 %v392
        %v481 = vpop.f32.mrb[0].mxu0
        %v482 = vadd.f32 0.0, %v481
        %v483 = vpop.f32.mrb[0].mxu0
        %484 = vmatprep.mubr.f32.mxu0 0.0
        %485 = vmatmul.mubr.f32.gmra.mrb[0].mxu0 %v395
        %v486 = vpop.f32.mrb[0].mxu0
        %v487 = vadd.f32 0.0, %v486
        %v488 = vpop.f32.mrb[0].mxu0
        %489 = vmatprep.mubr.f32.mxu0 0.0
        %490 = vmatmul.mubr.f32.gmra.mrb[0].mxu0 %v398
        %v491 = vpop.f32.mrb[0].mxu0
        %v492 = vadd.f32 0.0, %v491
        %v493 = vpop.f32.mrb[0].mxu0
        %494 = vdwg.mxu0
        %v495 = vld [vmem:[%s3] sm:$0xff]
        %v496 = vld [vmem:[%s3 + $0x8] sm:$0xff]
        %v497 = vld [vmem:[%s3 + $0x10] sm:$0xff]
        %v498 = vld [vmem:[%s3 + $0x18] sm:$0xff]
        %vm499 = vcmask 64512
        %v501 = vsel %vm499, %v495, 0
        %v504 = vsel %vm499, %v496, 0
        %v507 = vsel %vm499, %v497, 0
        %v510 = vsel %vm499, %v498, 0
        %512 = vmatprep.subr.mxu0 0.0
        %513 = vmatpush1.msra.mxu0 %v374
        %514 = vmatprep.subr.mxu0 0.0
        %515 = vmatpush1.msra.mxu0 0.0
        %516 = vmatprep.subr.mxu0 0.0
        %517 = vmatpush1.msra.mxu0 0.0
        %518 = vmatprep.subr.mxu0 0.0
        %519 = vmatpush1.msra.mxu0 0.0
        %520 = vmatprep.subr.mxu0 0.0
        %521 = vmatpush1.msra.mxu0 0.0
        %522 = vmatprep.subr.mxu0 0.0
        %523 = vmatpush1.msra.mxu0 0.0
        %524 = vmatprep.subr.mxu0 0.0
        %525 = vmatpush1.msra.mxu0 0.0
        %526 = vmatprep.subr.mxu0 0.0
        %527 = vmatpush1.msra.mxu0 0.0
        %528 = vmatprep.subr.mxu0 0.0
        %529 = vmatpush1.msra.mxu0 0.0
        %530 = vmatprep.subr.mxu0 0.0
        %531 = vmatpush1.msra.mxu0 0.0
        %532 = vmatprep.subr.mxu0 0.0
        %533 = vmatpush1.msra.mxu0 0.0
        %534 = vmatprep.subr.mxu0 0.0
        %535 = vmatpush1.msra.mxu0 0.0
        %536 = vmatprep.subr.mxu0 0.0
        %537 = vmatpush1.msra.mxu0 0.0
        %538 = vmatprep.subr.mxu0 0.0
        %539 = vmatpush1.msra.mxu0 0.0
        %540 = vmatprep.subr.mxu0 0.0
        %541 = vmatpush1.msra.mxu0 0.0
        %542 = vmatprep.subr.mxu0 0.0
        %543 = vmatpush1.msra.mxu0 0.0
        %544 = vmatprep.subr.mxu0 0.0
        %545 = vmatpush1.msra.mxu0 0.0
        %546 = vmatprep.subr.mxu0 0.0
        %547 = vmatpush1.msra.mxu0 0.0
        %548 = vmatprep.subr.mxu0 0.0
        %549 = vmatpush1.msra.mxu0 0.0
        %550 = vmatprep.subr.mxu0 0.0
        %551 = vmatpush1.msra.mxu0 0.0
        %552 = vmatprep.subr.mxu0 0.0
        %553 = vmatpush1.msra.mxu0 0.0
        %554 = vmatprep.subr.mxu0 0.0
        %555 = vmatpush1.msra.mxu0 0.0
        %556 = vmatprep.subr.mxu0 0.0
        %557 = vmatpush1.msra.mxu0 0.0
        %558 = vmatprep.subr.mxu0 0.0
        %559 = vmatpush1.msra.mxu0 0.0
        %560 = vmatprep.subr.mxu0 0.0
        %561 = vmatpush1.msra.mxu0 0.0
        %562 = vmatprep.subr.mxu0 0.0
        %563 = vmatpush1.msra.mxu0 0.0
        %564 = vmatprep.subr.mxu0 0.0
        %565 = vmatpush1.msra.mxu0 0.0
        %566 = vmatprep.subr.mxu0 0.0
        %567 = vmatpush1.msra.mxu0 0.0
        %568 = vmatprep.subr.mxu0 0.0
        %569 = vmatpush1.msra.mxu0 0.0
        %570 = vmatprep.subr.mxu0 0.0
        %571 = vmatpush1.msra.mxu0 0.0
        %572 = vmatprep.subr.mxu0 0.0
        %573 = vmatpush1.msra.mxu0 0.0
        %574 = vmatprep.subr.mxu0 0.0
        %575 = vmatpush1.msra.mxu0 0.0
        %576 = vmatprep.mubr.f32.mxu0 0.0
        %577 = vmatmul.mubr.f32.gmra.mrb[0].mxu0 %v501
        %v578 = vpop.f32.mrb[0].mxu0
        %v579 = vadd.f32 0.0, %v578
        %v580 = vpop.f32.mrb[0].mxu0
        %581 = vmatprep.mubr.f32.mxu0 0.0
        %582 = vmatmul.mubr.f32.gmra.mrb[0].mxu0 %v504
        %v583 = vpop.f32.mrb[0].mxu0
        %v584 = vadd.f32 0.0, %v583
        %v585 = vpop.f32.mrb[0].mxu0
        %586 = vmatprep.mubr.f32.mxu0 0.0
        %587 = vmatmul.mubr.f32.gmra.mrb[0].mxu0 %v507
        %v588 = vpop.f32.mrb[0].mxu0
        %v589 = vadd.f32 0.0, %v588
        %v590 = vpop.f32.mrb[0].mxu0
        %591 = vmatprep.mubr.f32.mxu0 0.0
        %592 = vmatmul.mubr.f32.gmra.mrb[0].mxu0 %v510
        %v593 = vpop.f32.mrb[0].mxu0
        %v594 = vadd.f32 0.0, %v593
        %v595 = vpop.f32.mrb[0].mxu0
        %596 = vdwg.mxu0
        %v597 = vadd.f32 %v477, %v579
        %v598 = vadd.f32 %v482, %v584
        %v599 = vadd.f32 %v487, %v589
        %v600 = vadd.f32 %v492, %v594
        %v601 = vld [vmem:[%s4] sm:$0xff]
        %v602 = vld [vmem:[%s4 + $0x8] sm:$0xff]
        %v603 = vld [vmem:[%s4 + $0x10] sm:$0xff]
        %v604 = vld [vmem:[%s4 + $0x18] sm:$0xff]
        %606 = vset.pattern.permute.xlu0 0
        %607 = vperm.xlu0 %606, %v601
        %v608 = vpop.permute.xlu0 %607
        %611 = vset.pattern.permute.xlu0 0
        %612 = vperm.xlu0 %611, %v602
        %v613 = vpop.permute.xlu0 %612
        %616 = vset.pattern.permute.xlu0 0
        %617 = vperm.xlu0 %616, %v603
        %v618 = vpop.permute.xlu0 %617
        %621 = vset.pattern.permute.xlu0 0
        %622 = vperm.xlu0 %621, %v604
        %v623 = vpop.permute.xlu0 %622
        %v625 = vadd.f32 %v597, %v608
        %v626 = vadd.f32 %v598, %v613
        %v627 = vadd.f32 %v599, %v618
        %v628 = vadd.f32 %v600, %v623
        %v629 = vmax.f32 %v625, 0.0
        %v630 = vmax.f32 %v626, 0.0
        %v631 = vmax.f32 %v627, 0.0
        %v632 = vmax.f32 %v628, 0.0
        %v633 = vld [vmem:[%s5] sm:$0xff]
        %v634 = vld [vmem:[%s5 + $0x8] sm:$0xff]
        %v635 = vld [vmem:[%s6] sm:$0xff]
        %v636 = vld [vmem:[%s6 + $0x8] sm:$0xff]
        %638 = vset.pattern.permute.xlu0 0
        %639 = vperm.xlu0 %638, %v635
        %v640 = vpop.permute.xlu0 %639
        %643 = vset.pattern.permute.xlu0 0
        %644 = vperm.xlu0 %643, %v636
        %v645 = vpop.permute.xlu0 %644
        %vm647 = vcmask 261120
        %v649 = vsel %vm647, %v633, 0
        %v652 = vsel %vm647, %v634, 0
        %654 = vmatprep.subr.mxu0 0.0
        %655 = vmatpush1.msra.mxu0 %v629
        %656 = vmatprep.subr.mxu0 0.0
        %657 = vmatpush1.msra.mxu0 %v630
        %658 = vmatprep.subr.mxu0 0.0
        %659 = vmatpush1.msra.mxu0 %v631
        %660 = vmatprep.subr.mxu0 0.0
        %661 = vmatpush1.msra.mxu0 %v632
        %662 = vmatprep.subr.mxu0 0.0
        %663 = vmatpush1.msra.mxu0 0.0
        %664 = vmatprep.subr.mxu0 0.0
        %665 = vmatpush1.msra.mxu0 0.0
        %666 = vmatprep.subr.mxu0 0.0
        %667 = vmatpush1.msra.mxu0 0.0
        %668 = vmatprep.subr.mxu0 0.0
        %669 = vmatpush1.msra.mxu0 0.0
        %670 = vmatprep.subr.mxu0 0.0
        %671 = vmatpush1.msra.mxu0 0.0
        %672 = vmatprep.subr.mxu0 0.0
        %673 = vmatpush1.msra.mxu0 0.0
        %674 = vmatprep.subr.mxu0 0.0
        %675 = vmatpush1.msra.mxu0 0.0
        %676 = vmatprep.subr.mxu0 0.0
        %677 = vmatpush1.msra.mxu0 0.0
        %678 = vmatprep.subr.mxu0 0.0
        %679 = vmatpush1.msra.mxu0 0.0
        %680 = vmatprep.subr.mxu0 0.0
        %681 = vmatpush1.msra.mxu0 0.0
        %682 = vmatprep.subr.mxu0 0.0
        %683 = vmatpush1.msra.mxu0 0.0
        %684 = vmatprep.subr.mxu0 0.0
        %685 = vmatpush1.msra.mxu0 0.0
        %686 = vmatprep.subr.mxu0 0.0
        %687 = vmatpush1.msra.mxu0 0.0
        %688 = vmatprep.subr.mxu0 0.0
        %689 = vmatpush1.msra.mxu0 0.0
        %690 = vmatprep.subr.mxu0 0.0
        %691 = vmatpush1.msra.mxu0 0.0
        %692 = vmatprep.subr.mxu0 0.0
        %693 = vmatpush1.msra.mxu0 0.0
        %694 = vmatprep.subr.mxu0 0.0
        %695 = vmatpush1.msra.mxu0 0.0
        %696 = vmatprep.subr.mxu0 0.0
        %697 = vmatpush1.msra.mxu0 0.0
        %698 = vmatprep.subr.mxu0 0.0
        %699 = vmatpush1.msra.mxu0 0.0
        %700 = vmatprep.subr.mxu0 0.0
        %701 = vmatpush1.msra.mxu0 0.0
        %702 = vmatprep.subr.mxu0 0.0
        %703 = vmatpush1.msra.mxu0 0.0
        %704 = vmatprep.subr.mxu0 0.0
        %705 = vmatpush1.msra.mxu0 0.0
        %706 = vmatprep.subr.mxu0 0.0
        %707 = vmatpush1.msra.mxu0 0.0
        %708 = vmatprep.subr.mxu0 0.0
        %709 = vmatpush1.msra.mxu0 0.0
        %710 = vmatprep.subr.mxu0 0.0
        %711 = vmatpush1.msra.mxu0 0.0
        %712 = vmatprep.subr.mxu0 0.0
        %713 = vmatpush1.msra.mxu0 0.0
        %714 = vmatprep.subr.mxu0 0.0
        %715 = vmatpush1.msra.mxu0 0.0
        %716 = vmatprep.subr.mxu0 0.0
        %717 = vmatpush1.msra.mxu0 0.0
        %718 = vmatprep.mubr.f32.mxu0 0.0
        %719 = vmatmul.mubr.f32.gmra.mrb[0].mxu0 %v649
        %v720 = vpop.f32.mrb[0].mxu0
        %v721 = vadd.f32 %v640, %v720
        %v722 = vpop.f32.mrb[0].mxu0
        %723 = vmatprep.mubr.f32.mxu0 0.0
        %724 = vmatmul.mubr.f32.gmra.mrb[0].mxu0 %v652
        %v725 = vpop.f32.mrb[0].mxu0
        %v726 = vadd.f32 %v645, %v725
        %v727 = vpop.f32.mrb[0].mxu0
        %728 = vdwg.mxu0
        %v729 = vtanh.pop %v721
        %v730 = vmul.f32 %v729, 2.0
        %v731 = vmul.f32 %v730, 1.442695
        %v732 = vpow.pop %v731
        %v733 = vmul.f32 %v472, %v732
        %v734 = vadd.f32 %v733, %v726
        %vm735 = vcmask 523264
        %v736 = vsel %vm735, %v730, 0.0
        %v737 = vrot.slane %v736, 4
        %v738 = vadd.f32 %v736, %v737
        %v739 = vrot.slane %v738, 2
        %v740 = vadd.f32 %v738, %v739
        %v741 = vrot.slane %v740, 1
        %v742 = vadd.f32 %v740, %v741
        %v743 = vadd.f32 %v742, 0.0
        %s744 = scalar_lea.vmem %s2, 48
        %v745 = vld [vmem:[%s744] sm:$0xff]
        %v746 = vld [vmem:[%s744 + $0x8] sm:$0xff]
        %v747 = vld [vmem:[%s744 + $0x10] sm:$0xff]
        %v748 = vld [vmem:[%s744 + $0x18] sm:$0xff]
        %v749 = vld [vmem:[%s744 + $0x20] sm:$0xff]
        %v750 = vld [vmem:[%s744 + $0x28] sm:$0xff]
        %v752 = vsel %vm381, %v745, 0
        %v755 = vsel %vm381, %v746, 0
        %v758 = vsel %vm381, %v747, 0
        %v761 = vsel %vm381, %v748, 0
        %v764 = vsel %vm381, %v749, 0
        %v767 = vsel %vm381, %v750, 0
        %769 = vmatprep.subr.mxu0 0.0
        %770 = vmatpush1.msra.mxu0 %v467
        %771 = vmatprep.subr.mxu0 0.0
        %772 = vmatpush1.msra.mxu0 %v734
        %773 = vmatprep.subr.mxu0 0.0
        %774 = vmatpush1.msra.mxu0 0.0
        %775 = vmatprep.subr.mxu0 0.0
        %776 = vmatpush1.msra.mxu0 0.0
        %777 = vmatprep.subr.mxu0 0.0
        %778 = vmatpush1.msra.mxu0 0.0
        %779 = vmatprep.subr.mxu0 0.0
        %780 = vmatpush1.msra.mxu0 0.0
        %781 = vmatprep.subr.mxu0 0.0
        %782 = vmatpush1.msra.mxu0 0.0
        %783 = vmatprep.subr.mxu0 0.0
        %784 = vmatpush1.msra.mxu0 0.0
        %785 = vmatprep.subr.mxu0 0.0
        %786 = vmatpush1.msra.mxu0 0.0
        %787 = vmatprep.subr.mxu0 0.0
        %788 = vmatpush1.msra.mxu0 0.0
        %789 = vmatprep.subr.mxu0 0.0
        %790 = vmatpush1.msra.mxu0 0.0
        %791 = vmatprep.subr.mxu0 0.0
        %792 = vmatpush1.msra.mxu0 0.0
        %793 = vmatprep.subr.mxu0 0.0
        %794 = vmatpush1.msra.mxu0 0.0
        %795 = vmatprep.subr.mxu0 0.0
        %796 = vmatpush1.msra.mxu0 0.0
        %797 = vmatprep.subr.mxu0 0.0
        %798 = vmatpush1.msra.mxu0 0.0
        %799 = vmatprep.subr.mxu0 0.0
        %800 = vmatpush1.msra.mxu0 0.0
        %801 = vmatprep.subr.mxu0 0.0
        %802 = vmatpush1.msra.mxu0 0.0
        %803 = vmatprep.subr.mxu0 0.0
        %804 = vmatpush1.msra.mxu0 0.0
        %805 = vmatprep.subr.mxu0 0.0
        %806 = vmatpush1.msra.mxu0 0.0
        %807 = vmatprep.subr.mxu0 0.0
        %808 = vmatpush1.msra.mxu0 0.0
        %809 = vmatprep.subr.mxu0 0.0
        %810 = vmatpush1.msra.mxu0 0.0
        %811 = vmatprep.subr.mxu0 0.0
        %812 = vmatpush1.msra.mxu0 0.0
        %813 = vmatprep.subr.mxu0 0.0
        %814 = vmatpush1.msra.mxu0 0.0
        %815 = vmatprep.subr.mxu0 0.0
        %816 = vmatpush1.msra.mxu0 0.0
        %817 = vmatprep.subr.mxu0 0.0
        %818 = vmatpush1.msra.mxu0 0.0
        %819 = vmatprep.subr.mxu0 0.0
        %820 = vmatpush1.msra.mxu0 0.0
        %821 = vmatprep.subr.mxu0 0.0
        %822 = vmatpush1.msra.mxu0 0.0
        %823 = vmatprep.subr.mxu0 0.0
        %824 = vmatpush1.msra.mxu0 0.0
        %825 = vmatprep.subr.mxu0 0.0
        %826 = vmatpush1.msra.mxu0 0.0
        %827 = vmatprep.subr.mxu0 0.0
        %828 = vmatpush1.msra.mxu0 0.0
        %829 = vmatprep.subr.mxu0 0.0
        %830 = vmatpush1.msra.mxu0 0.0
        %831 = vmatprep.subr.mxu0 0.0
        %832 = vmatpush1.msra.mxu0 0.0
        %833 = vmatprep.mubr.f32.mxu0 0.0
        %834 = vmatmul.mubr.f32.gmra.mrb[0].mxu0 %v752
        %v835 = vpop.f32.mrb[0].mxu0
        %v836 = vadd.f32 0.0, %v835
        %v837 = vpop.f32.mrb[0].mxu0
        %838 = vmatprep.mubr.f32.mxu0 0.0
        %839 = vmatmul.mubr.f32.gmra.mrb[0].mxu0 %v755
        %v840 = vpop.f32.mrb[0].mxu0
        %v841 = vadd.f32 0.0, %v840
        %v842 = vpop.f32.mrb[0].mxu0
        %843 = vmatprep.mubr.f32.mxu0 0.0
        %844 = vmatmul.mubr.f32.gmra.mrb[0].mxu0 %v758
        %v845 = vpop.f32.mrb[0].mxu0
        %v846 = vadd.f32 0.0, %v845
        %v847 = vpop.f32.mrb[0].mxu0
        %848 = vmatprep.mubr.f32.mxu0 0.0
        %849 = vmatmul.mubr.f32.gmra.mrb[0].mxu0 %v761
        %v850 = vpop.f32.mrb[0].mxu0
        %v851 = vadd.f32 0.0, %v850
        %v852 = vpop.f32.mrb[0].mxu0
        %853 = vmatprep.mubr.f32.mxu0 0.0
        %854 = vmatmul.mubr.f32.gmra.mrb[0].mxu0 %v764
        %v855 = vpop.f32.mrb[0].mxu0
        %v856 = vadd.f32 0.0, %v855
        %v857 = vpop.f32.mrb[0].mxu0
        %858 = vmatprep.mubr.f32.mxu0 0.0
        %859 = vmatmul.mubr.f32.gmra.mrb[0].mxu0 %v767
        %v860 = vpop.f32.mrb[0].mxu0
        %v861 = vadd.f32 0.0, %v860
        %v862 = vpop.f32.mrb[0].mxu0
        %863 = vdwg.mxu0
        %s864 = scalar_lea.vmem %s3, 32
        %v865 = vld [vmem:[%s864] sm:$0xff]
        %v866 = vld [vmem:[%s864 + $0x8] sm:$0xff]
        %v867 = vld [vmem:[%s864 + $0x10] sm:$0xff]
        %v868 = vld [vmem:[%s864 + $0x18] sm:$0xff]
        %v870 = vsel %vm499, %v865, 0
        %v873 = vsel %vm499, %v866, 0
        %v876 = vsel %vm499, %v867, 0
        %v879 = vsel %vm499, %v868, 0
        %881 = vmatprep.subr.mxu0 0.0
        %882 = vmatpush1.msra.mxu0 %v374
        %883 = vmatprep.subr.mxu0 0.0
        %884 = vmatpush1.msra.mxu0 0.0
        %885 = vmatprep.subr.mxu0 0.0
        %886 = vmatpush1.msra.mxu0 0.0
        %887 = vmatprep.subr.mxu0 0.0
        %888 = vmatpush1.msra.mxu0 0.0
        %889 = vmatprep.subr.mxu0 0.0
        %890 = vmatpush1.msra.mxu0 0.0
        %891 = vmatprep.subr.mxu0 0.0
        %892 = vmatpush1.msra.mxu0 0.0
        %893 = vmatprep.subr.mxu0 0.0
        %894 = vmatpush1.msra.mxu0 0.0
        %895 = vmatprep.subr.mxu0 0.0
        %896 = vmatpush1.msra.mxu0 0.0
        %897 = vmatprep.subr.mxu0 0.0
        %898 = vmatpush1.msra.mxu0 0.0
        %899 = vmatprep.subr.mxu0 0.0
        %900 = vmatpush1.msra.mxu0 0.0
        %901 = vmatprep.subr.mxu0 0.0
        %902 = vmatpush1.msra.mxu0 0.0
        %903 = vmatprep.subr.mxu0 0.0
        %904 = vmatpush1.msra.mxu0 0.0
        %905 = vmatprep.subr.mxu0 0.0
        %906 = vmatpush1.msra.mxu0 0.0
        %907 = vmatprep.subr.mxu0 0.0
        %908 = vmatpush1.msra.mxu0 0.0
        %909 = vmatprep.subr.mxu0 0.0
        %910 = vmatpush1.msra.mxu0 0.0
        %911 = vmatprep.subr.mxu0 0.0
        %912 = vmatpush1.msra.mxu0 0.0
        %913 = vmatprep.subr.mxu0 0.0
        %914 = vmatpush1.msra.mxu0 0.0
        %915 = vmatprep.subr.mxu0 0.0
        %916 = vmatpush1.msra.mxu0 0.0
        %917 = vmatprep.subr.mxu0 0.0
        %918 = vmatpush1.msra.mxu0 0.0
        %919 = vmatprep.subr.mxu0 0.0
        %920 = vmatpush1.msra.mxu0 0.0
        %921 = vmatprep.subr.mxu0 0.0
        %922 = vmatpush1.msra.mxu0 0.0
        %923 = vmatprep.subr.mxu0 0.0
        %924 = vmatpush1.msra.mxu0 0.0
        %925 = vmatprep.subr.mxu0 0.0
        %926 = vmatpush1.msra.mxu0 0.0
        %927 = vmatprep.subr.mxu0 0.0
        %928 = vmatpush1.msra.mxu0 0.0
        %929 = vmatprep.subr.mxu0 0.0
        %930 = vmatpush1.msra.mxu0 0.0
        %931 = vmatprep.subr.mxu0 0.0
        %932 = vmatpush1.msra.mxu0 0.0
        %933 = vmatprep.subr.mxu0 0.0
        %934 = vmatpush1.msra.mxu0 0.0
        %935 = vmatprep.subr.mxu0 0.0
        %936 = vmatpush1.msra.mxu0 0.0
        %937 = vmatprep.subr.mxu0 0.0
        %938 = vmatpush1.msra.mxu0 0.0
        %939 = vmatprep.subr.mxu0 0.0
        %940 = vmatpush1.msra.mxu0 0.0
        %941 = vmatprep.subr.mxu0 0.0
        %942 = vmatpush1.msra.mxu0 0.0
        %943 = vmatprep.subr.mxu0 0.0
        %944 = vmatpush1.msra.mxu0 0.0
        %945 = vmatprep.mubr.f32.mxu0 0.0
        %946 = vmatmul.mubr.f32.gmra.mrb[0].mxu0 %v870
        %v947 = vpop.f32.mrb[0].mxu0
        %v948 = vadd.f32 0.0, %v947
        %v949 = vpop.f32.mrb[0].mxu0
        %950 = vmatprep.mubr.f32.mxu0 0.0
        %951 = vmatmul.mubr.f32.gmra.mrb[0].mxu0 %v873
        %v952 = vpop.f32.mrb[0].mxu0
        %v953 = vadd.f32 0.0, %v952
        %v954 = vpop.f32.mrb[0].mxu0
        %955 = vmatprep.mubr.f32.mxu0 0.0
        %956 = vmatmul.mubr.f32.gmra.mrb[0].mxu0 %v876
        %v957 = vpop.f32.mrb[0].mxu0
        %v958 = vadd.f32 0.0, %v957
        %v959 = vpop.f32.mrb[0].mxu0
        %960 = vmatprep.mubr.f32.mxu0 0.0
        %961 = vmatmul.mubr.f32.gmra.mrb[0].mxu0 %v879
        %v962 = vpop.f32.mrb[0].mxu0
        %v963 = vadd.f32 0.0, %v962
        %v964 = vpop.f32.mrb[0].mxu0
        %965 = vdwg.mxu0
        %v966 = vadd.f32 %v846, %v948
        %v967 = vadd.f32 %v851, %v953
        %v968 = vadd.f32 %v856, %v958
        %v969 = vadd.f32 %v861, %v963
        %s970 = scalar_lea.vmem %s4, 32
        %v971 = vld [vmem:[%s970] sm:$0xff]
        %v972 = vld [vmem:[%s970 + $0x8] sm:$0xff]
        %v973 = vld [vmem:[%s970 + $0x10] sm:$0xff]
        %v974 = vld [vmem:[%s970 + $0x18] sm:$0xff]
        %976 = vset.pattern.permute.xlu0 0
        %977 = vperm.xlu0 %976, %v971
        %v978 = vpop.permute.xlu0 %977
        %981 = vset.pattern.permute.xlu0 0
        %982 = vperm.xlu0 %981, %v972
        %v983 = vpop.permute.xlu0 %982
        %986 = vset.pattern.permute.xlu0 0
        %987 = vperm.xlu0 %986, %v973
        %v988 = vpop.permute.xlu0 %987
        %991 = vset.pattern.permute.xlu0 0
        %992 = vperm.xlu0 %991, %v974
        %v993 = vpop.permute.xlu0 %992
        %v995 = vadd.f32 %v966, %v978
        %v996 = vadd.f32 %v967, %v983
        %v997 = vadd.f32 %v968, %v988
        %v998 = vadd.f32 %v969, %v993
        %v999 = vmax.f32 %v995, 0.0
        %v1000 = vmax.f32 %v996, 0.0
        %v1001 = vmax.f32 %v997, 0.0
        %v1002 = vmax.f32 %v998, 0.0
        %s1003 = scalar_lea.vmem %s5, 16
        %v1004 = vld [vmem:[%s1003] sm:$0xff]
        %v1005 = vld [vmem:[%s1003 + $0x8] sm:$0xff]
        %s1006 = scalar_lea.vmem %s6, 16
        %v1007 = vld [vmem:[%s1006] sm:$0xff]
        %v1008 = vld [vmem:[%s1006 + $0x8] sm:$0xff]
        %1010 = vset.pattern.permute.xlu0 0
        %1011 = vperm.xlu0 %1010, %v1007
        %v1012 = vpop.permute.xlu0 %1011
        %1015 = vset.pattern.permute.xlu0 0
        %1016 = vperm.xlu0 %1015, %v1008
        %v1017 = vpop.permute.xlu0 %1016
        %v1020 = vsel %vm647, %v1004, 0
        %v1023 = vsel %vm647, %v1005, 0
        %1025 = vmatprep.subr.mxu0 0.0
        %1026 = vmatpush1.msra.mxu0 %v999
        %1027 = vmatprep.subr.mxu0 0.0
        %1028 = vmatpush1.msra.mxu0 %v1000
        %1029 = vmatprep.subr.mxu0 0.0
        %1030 = vmatpush1.msra.mxu0 %v1001
        %1031 = vmatprep.subr.mxu0 0.0
        %1032 = vmatpush1.msra.mxu0 %v1002
        %1033 = vmatprep.subr.mxu0 0.0
        %1034 = vmatpush1.msra.mxu0 0.0
        %1035 = vmatprep.subr.mxu0 0.0
        %1036 = vmatpush1.msra.mxu0 0.0
        %1037 = vmatprep.subr.mxu0 0.0
        %1038 = vmatpush1.msra.mxu0 0.0
        %1039 = vmatprep.subr.mxu0 0.0
        %1040 = vmatpush1.msra.mxu0 0.0
        %1041 = vmatprep.subr.mxu0 0.0
        %1042 = vmatpush1.msra.mxu0 0.0
        %1043 = vmatprep.subr.mxu0 0.0
        %1044 = vmatpush1.msra.mxu0 0.0
        %1045 = vmatprep.subr.mxu0 0.0
        %1046 = vmatpush1.msra.mxu0 0.0
        %1047 = vmatprep.subr.mxu0 0.0
        %1048 = vmatpush1.msra.mxu0 0.0
        %1049 = vmatprep.subr.mxu0 0.0
        %1050 = vmatpush1.msra.mxu0 0.0
        %1051 = vmatprep.subr.mxu0 0.0
        %1052 = vmatpush1.msra.mxu0 0.0
        %1053 = vmatprep.subr.mxu0 0.0
        %1054 = vmatpush1.msra.mxu0 0.0
        %1055 = vmatprep.subr.mxu0 0.0
        %1056 = vmatpush1.msra.mxu0 0.0
        %1057 = vmatprep.subr.mxu0 0.0
        %1058 = vmatpush1.msra.mxu0 0.0
        %1059 = vmatprep.subr.mxu0 0.0
        %1060 = vmatpush1.msra.mxu0 0.0
        %1061 = vmatprep.subr.mxu0 0.0
        %1062 = vmatpush1.msra.mxu0 0.0
        %1063 = vmatprep.subr.mxu0 0.0
        %1064 = vmatpush1.msra.mxu0 0.0
        %1065 = vmatprep.subr.mxu0 0.0
        %1066 = vmatpush1.msra.mxu0 0.0
        %1067 = vmatprep.subr.mxu0 0.0
        %1068 = vmatpush1.msra.mxu0 0.0
        %1069 = vmatprep.subr.mxu0 0.0
        %1070 = vmatpush1.msra.mxu0 0.0
        %1071 = vmatprep.subr.mxu0 0.0
        %1072 = vmatpush1.msra.mxu0 0.0
        %1073 = vmatprep.subr.mxu0 0.0
        %1074 = vmatpush1.msra.mxu0 0.0
        %1075 = vmatprep.subr.mxu0 0.0
        %1076 = vmatpush1.msra.mxu0 0.0
        %1077 = vmatprep.subr.mxu0 0.0
        %1078 = vmatpush1.msra.mxu0 0.0
        %1079 = vmatprep.subr.mxu0 0.0
        %1080 = vmatpush1.msra.mxu0 0.0
        %1081 = vmatprep.subr.mxu0 0.0
        %1082 = vmatpush1.msra.mxu0 0.0
        %1083 = vmatprep.subr.mxu0 0.0
        %1084 = vmatpush1.msra.mxu0 0.0
        %1085 = vmatprep.subr.mxu0 0.0
        %1086 = vmatpush1.msra.mxu0 0.0
        %1087 = vmatprep.subr.mxu0 0.0
        %1088 = vmatpush1.msra.mxu0 0.0
        %1089 = vmatprep.mubr.f32.mxu0 0.0
        %1090 = vmatmul.mubr.f32.gmra.mrb[0].mxu0 %v1020
        %v1091 = vpop.f32.mrb[0].mxu0
        %v1092 = vadd.f32 %v1012, %v1091
        %v1093 = vpop.f32.mrb[0].mxu0
        %1094 = vmatprep.mubr.f32.mxu0 0.0
        %1095 = vmatmul.mubr.f32.gmra.mrb[0].mxu0 %v1023
        %v1096 = vpop.f32.mrb[0].mxu0
        %v1097 = vadd.f32 %v1017, %v1096
        %v1098 = vpop.f32.mrb[0].mxu0
        %1099 = vdwg.mxu0
        %v1100 = vtanh.pop %v1092
        %v1101 = vmul.f32 %v1100, 2.0
        %v1102 = vmul.f32 %v1101, 1.442695
        %v1103 = vpow.pop %v1102
        %v1104 = vmul.f32 %v841, %v1103
        %v1105 = vadd.f32 %v1104, %v1097
        %v1106 = vsel %vm735, %v1101, 0.0
        %v1107 = vrot.slane %v1106, 4
        %v1108 = vadd.f32 %v1106, %v1107
        %v1109 = vrot.slane %v1108, 2
        %v1110 = vadd.f32 %v1108, %v1109
        %v1111 = vrot.slane %v1110, 1
        %v1112 = vadd.f32 %v1110, %v1111
        %v1113 = vadd.f32 %v743, %v1112
        %1114 = vst.msk [vmem:[%s347] sm:$0xff] %vm735, %v836
        %1115 = vst.msk [vmem:[%s347 + $0x8] sm:$0xff] %vm735, %v1105
        %vm1116 = vcmask 516096
        %1117 = vst.msk [vmem:[%s353] sm:$0x1] %vm1116, %v1113
        %s1118 = sand.u32 %s209, 1
        %s1119 = scalar_lea.sflag [#allocation3], %s1118
        %s1120 = sand.u32 %s209, 1
        %s1121 = smul.addr %s1120, 16
        %s1122 = scalar_lea.vmem [#allocation2], %s1121
        %s1123 = sand.u32 %s237, 1
        %s1124 = scalar_lea.sflag [#allocation5], %s1123
        %s1125 = sand.u32 %s237, 1
        %s1126 = scalar_lea.vmem [#allocation4], %s1125
        // Predicated region
        $region49: #{tpu_custom_call.1} parent=47 // pred_check
          %p1127 = pneg %p219
        $region50: #{tpu_custom_call.1} parent=47 // pred_check_branch
          %1129 = sbr.rel (%p1127) target = $region52
        $region51: #{tpu_custom_call.1} parent=47 // pred_region
          %s1131 = ssub.s32 256, 256
          %1132 = vsyncadd %s1119, %s1131
          %s1133 = smul.addr %s30, 2
          %s1134 = sadd.s32 %s31, %s1133
          %s1135 = smul.addr %s1134, 128
          %s1136 = scalar_lea.hbm %s7, %s1135
          %s1137 = sshll.u32 %s1122, 4
          %s1138 = int_to_ptr.vmem [resolvable:$true] %s1137
          %1143 = dma.vmem_to_hbm [thread:$0]  %s1138, 256, %s1136, %s1119, 128, 128, 8
        $region52: #{tpu_custom_call.1} parent=47 // pred_fallthru
          _
        // Predicated region
        $region53: #{tpu_custom_call.1} parent=47 // pred_check
          %p1144 = pneg %p247
        $region54: #{tpu_custom_call.1} parent=47 // pred_check_branch
          %1146 = sbr.rel (%p1144) target = $region56
        $region55: #{tpu_custom_call.1} parent=47 // pred_region
          %s1148 = ssub.s32 16, 16
          %1149 = vsyncadd %s1124, %s1148
          %s1150 = sadd.s32 %s31, %s30
          %s1151 = smul.addr %s1150, 16
          %s1152 = scalar_lea.hbm %s8, %s1151
          %s1154 = sshll.u32 %s1126, 4
          %s1155 = int_to_ptr.vmem [resolvable:$true] %s1154
          %1157 = dma.vmem_to_hbm [thread:$0]  %s1155, 16, %s1152, %s1124
        $region56: #{tpu_custom_call.1} parent=47 // pred_fallthru
          _
      $region48: #{tpu_custom_call.1} parent=5 // pred_fallthru
        _
      %p1158 = scmp.le.s32.totalorder 2, %s21
      // Predicated region
      $region57: #{tpu_custom_call.1} parent=5 // pred_check
        %p1159 = pneg %p1158
      $region58: #{tpu_custom_call.1} parent=5 // pred_check_branch
        %1161 = sbr.rel (%p1159) target = $region60
      $region59: #{tpu_custom_call.1} parent=5 // pred_region
        %s1162 = ssub.s32 %s21, 2
        // Predicated region
        $region61: #{tpu_custom_call.1} parent=59 // pred_check
          %p1163 = pneg %p225
        $region62: #{tpu_custom_call.1} parent=59 // pred_check_branch
          %1165 = sbr.rel (%p1163) target = $region64
        $region63: #{tpu_custom_call.1} parent=59 // pred_region
          %s1166 = sand.u32 %s210, 1
          %s1167 = scalar_lea.sflag [#allocation3], %s1166
          %s1168 = sand.u32 %s210, 1
          %s1169 = smul.addr %s1168, 16
          %s1170 = scalar_lea.vmem [#allocation2], %s1169
          %1171 = dma.done %s1167, 256
        $region64: #{tpu_custom_call.1} parent=59 // pred_fallthru
          _
        // Predicated region
        $region65: #{tpu_custom_call.1} parent=59 // pred_check
          %p1172 = pneg %p253
        $region66: #{tpu_custom_call.1} parent=59 // pred_check_branch
          %1174 = sbr.rel (%p1172) target = $region68
        $region67: #{tpu_custom_call.1} parent=59 // pred_region
          %s1175 = sand.u32 %s238, 1
          %s1176 = scalar_lea.sflag [#allocation5], %s1175
          %s1177 = sand.u32 %s238, 1
          %s1178 = scalar_lea.vmem [#allocation4], %s1177
          %1179 = dma.done %s1176, 16
        $region68: #{tpu_custom_call.1} parent=59 // pred_fallthru
          _
      $region60: #{tpu_custom_call.1} parent=5 // pred_fallthru
        _
    $region6: #{tpu_custom_call.1} parent=1 // loop_footer
      %s25 = sadd.s32 1, %s21
    $region7: #{tpu_custom_call.1} parent=1 // loop_footer_branch
      %20 = sbr.rel target = $region3
    $region8: #{tpu_custom_call.1} parent=1 // loop_exit
      _
    %1180 = vsyncpa [#allocation3], 1
    %s1181 = scalar_lea.sflag [#allocation3], 1
    %1182 = vsyncpa %s1181, 1
    %1183 = vsyncpa [#allocation5], 1
    %s1184 = scalar_lea.sflag [#allocation5], 1
    %1185 = vsyncpa %s1184, 1

</llo_original>
